<compile_context>
chip_gen: v5e
topology: v5e:2x2
jax: 0.10.0
libtpu: 0.0.40
codegen_flags: <defaults>
</compile_context>

<pallas_src>
import jax
import jax.numpy as jnp
from jax.experimental import pallas as pl
from jax.experimental.pallas import tpu as pltpu


_TARGET_TILE_BYTES = 2 << 20       # aim for ~2 MiB of activations per grid step
_LANE_TILE_CAP = 2048              # max lanes per spatial tile
_MAX_BATCH_BLOCK = 64              # bound for the static unroll over the batch block
_SINGLE_BUFFER_M_BYTES = 1 << 20   # single-buffer M only when the waste matters


def _vmem_plan():
    """Returns (tile_budget, vmem_limit_cap) derived from physical VMEM capacity."""
    try:
        cap = int(pltpu.get_tpu_info().vmem_capacity_bytes)
    except Exception:          # conservative fallback (v7x-sized VMEM)
        cap = 64 << 20
    tile_budget = max(8 << 20, (cap * 3) // 4)    # 48 MiB on v7x, 96 MiB on v5e/v6e
    limit_cap = max(16 << 20, (cap * 7) // 8)     # 56 MiB on v7x, 112 MiB on v5e/v6e
    return tile_budget, limit_cap


# ----------------------------------------------------------------------------
# Kernels
# ----------------------------------------------------------------------------
def _mix_nchw_kernel(m_ref, x_ref, o_ref):
    # m_ref: [map_size, C_in] (constant)   x_ref: [B_BLK, C_in, t_hw]
    # o_ref: [B_BLK, map_size, t_hw]
    # M is the LHS with contraction on its trailing dim -> natural MXU orientation.
    # Tail tiles: each output element depends only on the matching (batch, lane)
    # column, so garbage in clipped regions is never written back.
    m = m_ref[...]
    for b in range(x_ref.shape[0]):               # static unroll over the batch block
        o_ref[b] = jnp.dot(m, x_ref[b],
                           preferred_element_type=jnp.float32).astype(o_ref.dtype)


def _mix_rows_kernel(mt_ref, x_ref, o_ref):
    # mt_ref: [C_in, map_size] (constant RHS)   x_ref: [t_r, C_in]   o_ref: [t_r, map_size]
    # Output lane axis = map_size -> lane-dense unmasked stores for deep-ResNet shapes.
    o_ref[...] = jnp.dot(x_ref[...], mt_ref[...],
                         preferred_element_type=jnp.float32).astype(o_ref.dtype)


# ----------------------------------------------------------------------------
# Tile planning
# ----------------------------------------------------------------------------
def _plan_nchw(n, c_in, map_size, hw, itemsize, tile_budget, m_buffers):
    # Lane tile: full extent if tiny or already a multiple of 128, otherwise the
    # largest multiple of 128 (tail blocks are clipped by Pallas -- safe here).
    if hw <= 128 or (hw % 128 == 0 and hw <= _LANE_TILE_CAP):
        t_hw = hw
    else:
        t_hw = max(128, (min(hw, _LANE_TILE_CAP) // 128) * 128)

    # Batch block sized so each grid step moves ~_TARGET_TILE_BYTES of x.
    per_b = max(1, c_in * t_hw * itemsize)
    b_blk = int(max(1, min(n, _TARGET_TILE_BYTES // per_b, _MAX_BATCH_BLOCK)))

    def need(b, t):
        # double-buffered x and out tiles + M with its actual buffer count
        return (2 * b * (c_in + map_size) * t + m_buffers * map_size * c_in) * itemsize

    while need(b_blk, t_hw) > tile_budget and (b_blk > 1 or t_hw > 128):
        if b_blk > 1:
            b_blk = (b_blk + 1) // 2
        else:
            t_hw = max(128, ((t_hw // 2) // 128) * 128)

    # Guarantee >=2 grid steps on a parallel axis when possible (v7x: 2 TensorCores).
    if pl.cdiv(n, b_blk) * pl.cdiv(hw, t_hw) < 2:
        if n >= 2:
            b_blk = (n + 1) // 2
        elif hw >= 256:
            t_hw = max(128, ((hw // 2) // 128) * 128)
    return b_blk, t_hw, need(b_blk, t_hw)


def _plan_rows(rows, c_in, map_size, itemsize, tile_budget, m_buffers):
    per_row = max(1, c_in * itemsize)
    t_r = int(max(8, min(rows, _TARGET_TILE_BYTES // per_row)))
    t_r = max(8, (t_r // 8) * 8)                  # sublane multiple
    if t_r >= rows:
        t_r = rows                                # full extent is always legal

    def need(t):
        return (2 * t * (c_in + map_size) + m_buffers * c_in * map_size) * itemsize

    while need(t_r) > tile_budget and t_r > 8:
        t_r = max(8, ((t_r // 2) // 8) * 8)

    if pl.cdiv(rows, t_r) < 2 and rows >= 16:     # >=2 steps for v7x's two TCs
        t_r = max(8, ((((rows + 1) // 2) + 7) // 8) * 8)
    return t_r, need(t_r)


# ----------------------------------------------------------------------------
# pallas_call wrappers
# ----------------------------------------------------------------------------
def _m_block_spec(shape, single_buffer):
    if single_buffer:
        # Constant index map -> M is only fetched once; drop the second pipeline
        # buffer so large mixing matrices don't steal VMEM from activation tiles.
        return pl.BlockSpec(shape, lambda *_: (0, 0),
                            pipeline_mode=pl.Buffered(buffer_count=1))
    return pl.BlockSpec(shape, lambda *_: (0, 0))


def _shortcut_nchw(x_flat, m):
    """x_flat: [N, C_in, H*W], m: [map_size, C_in] -> [N, map_size, H*W]."""
    n, c_in, hw = x_flat.shape
    map_size, c_in_m = m.shape
    assert c_in_m == c_in
    itemsize = jnp.dtype(x_flat.dtype).itemsize

    tile_budget, limit_cap = _vmem_plan()
    single_buffer_m = map_size * c_in * itemsize >= _SINGLE_BUFFER_M_BYTES
    b_blk, t_hw, vmem_need = _plan_nchw(n, c_in, map_size, hw, itemsize,
                                        tile_budget, 1 if single_buffer_m else 2)
    grid = (pl.cdiv(n, b_blk), pl.cdiv(hw, t_hw))

    cost = pl.CostEstimate(
        flops=2 * n * hw * c_in * map_size,
        transcendentals=0,
        bytes_accessed=(n * hw * (c_in + map_size) + map_size * c_in) * itemsize)
    vmem_limit = int(min(max(vmem_need + (2 << 20), 16 << 20), limit_cap))

    return pl.pallas_call(
        _mix_nchw_kernel,
        out_shape=jax.ShapeDtypeStruct((n, map_size, hw), x_flat.dtype),
        grid_spec=pltpu.PrefetchScalarGridSpec(
            num_scalar_prefetch=0,
            grid=grid,
            in_specs=[
                _m_block_spec((map_size, c_in), single_buffer_m),
                pl.BlockSpec((b_blk, c_in, t_hw), lambda b, j: (b, 0, j)),
            ],
            out_specs=pl.BlockSpec((b_blk, map_size, t_hw), lambda b, j: (b, 0, j)),
        ),
        compiler_params=pltpu.CompilerParams(
            dimension_semantics=("parallel", "parallel"),
            vmem_limit_bytes=vmem_limit),
        cost_estimate=cost,
    )(m, x_flat)


def _shortcut_rows(x_rows, mt):
    """x_rows: [N*H*W, C_in], mt: [C_in, map_size] -> [N*H*W, map_size]."""
    rows, c_in = x_rows.shape
    c_in_m, map_size = mt.shape
    assert c_in_m == c_in
    itemsize = jnp.dtype(x_rows.dtype).itemsize

    tile_budget, limit_cap = _vmem_plan()
    single_buffer_m = map_size * c_in * itemsize >= _SINGLE_BUFFER_M_BYTES
    t_r, vmem_need = _plan_rows(rows, c_in, map_size, itemsize,
                                tile_budget, 1 if single_buffer_m else 2)
    grid = (pl.cdiv(rows, t_r),)

    cost = pl.CostEstimate(
        flops=2 * rows * c_in * map_size,
        transcendentals=0,
        bytes_accessed=(rows * (c_in + map_size) + c_in * map_size) * itemsize)
    vmem_limit = int(min(max(vmem_need + (2 << 20), 16 << 20), limit_cap))

    return pl.pallas_call(
        _mix_rows_kernel,
        out_shape=jax.ShapeDtypeStruct((rows, map_size), x_rows.dtype),
        grid_spec=pltpu.PrefetchScalarGridSpec(
            num_scalar_prefetch=0,
            grid=grid,
            in_specs=[
                _m_block_spec((c_in, map_size), single_buffer_m),
                pl.BlockSpec((t_r, c_in), lambda i: (i, 0)),
            ],
            out_specs=pl.BlockSpec((t_r, map_size), lambda i: (i, 0)),
        ),
        compiler_params=pltpu.CompilerParams(
            dimension_semantics=("parallel",),
            vmem_limit_bytes=vmem_limit),
        cost_estimate=cost,
    )(mt, x_rows)


# ----------------------------------------------------------------------------
# Module wrapper: builds the fused mixing matrix from the deterministic index
# orders / weights.  (The original module has no learned tensors: empty `weight`
# Parameter, bias=None.)
# ----------------------------------------------------------------------------
class ShortcutNonExpanding:
    def __init__(self, num_neurons, *, is_client,
                 input_orders, orig_output_neurons,
                 map_orders, map_weights, map_size):
        self.num_neurons = num_neurons
        self.is_client = is_client
        self.orig_output_neurons = orig_output_neurons
        self.map_size = map_size

        # ---- gather+average: G[j, c] = (1/L) sum_o [input_orders[o][j] == c]
        L = len(input_orders)
        assert all(len(o) == orig_output_neurons for o in input_orders)
        g = jnp.zeros((orig_output_neurons, num_neurons), jnp.float32)
        for order in input_orders:
            g = g + jax.nn.one_hot(jnp.asarray(order, jnp.int32),
                                   num_neurons, dtype=jnp.float32)
        g = g / float(L)                                    # [orig, C_in]

        # ---- accumulating scatter: S[k, j] = sum_m w_m [map_orders[m][j] == k]
        # (matches torch.index_add_, which accumulates duplicate target indices)
        assert len(map_orders) == len(map_weights)
        assert all(len(o) == orig_output_neurons for o in map_orders)
        s = jnp.zeros((map_size, orig_output_neurons), jnp.float32)
        for order, wgt in zip(map_orders, map_weights):
            oh = jax.nn.one_hot(jnp.asarray(order, jnp.int32),
                                map_size, dtype=jnp.float32)   # [orig, map_size]
            s = s + jnp.float32(wgt) * oh.T

        # ---- fused mixing matrix: out_channels = S @ G @ x_channels
        self.m = s @ g                                      # [map_size, C_in], f32

    def __call__(self, x):
        if self.is_client:
            return x
        n, c, h, w = x.shape
        assert c == self.num_neurons
        hw = h * w
        m = self.m.astype(x.dtype)                          # match activation dtype

        # Deep-ResNet shapes (small H*W, 128-aligned channels): tile rows of the
        # [N*H*W, C_in] view so the output lane axis is map_size (lane-dense stores
        # and one large tileable row axis).  Otherwise keep NCHW with H*W on lanes
        # (no wrapper transposes at all).
        if (self.map_size % 128 == 0) and (c % 128 == 0) and hw < 512:
            x_rows = jnp.transpose(x, (0, 2, 3, 1)).reshape(n * hw, c)
            out_rows = _shortcut_rows(x_rows, jnp.transpose(m))
            return jnp.transpose(out_rows.reshape(n, h, w, self.map_size),
                                 (0, 3, 1, 2))
        out_flat = _shortcut_nchw(x.reshape(n, c, hw), m)
        return out_flat.reshape(n, self.map_size, h, w)


# ----------------------------------------------------------------------------
# Pure-JAX reference mirroring the PyTorch loop structure (for verification).
# ----------------------------------------------------------------------------
def reference_forward(x, input_orders, orig_output_neurons,
                      map_orders, map_weights, map_size):
    n, c, h, w = x.shape
    restored = jnp.zeros((n, orig_output_neurons, h, w), x.dtype)
    for order in input_orders:
        restored = restored + jnp.take(x, jnp.asarray(order, jnp.int32), axis=1)
    restored = restored / float(len(input_orders))
    out = jnp.zeros((n, map_size, h, w), x.dtype)
    for order, weight in zip(map_orders, map_weights):
        out = out.at[:, jnp.asarray(order, jnp.int32)].add(
            restored * jnp.float32(weight))                 # accumulating, like index_add_
    return out


def _run_case(name, key, *, n, c_in, h, w, orig, map_size, map_weights):
    ks = jax.random.split(key, 5)
    input_orders = [jax.random.randint(ks[1], (orig,), 0, c_in, dtype=jnp.int32),
                    jax.random.randint(ks[2], (orig,), 0, c_in, dtype=jnp.int32)]
    map_orders = [jax.random.randint(ks[3], (orig,), 0, map_size, dtype=jnp.int32),
                  jax.random.randint(ks[4], (orig,), 0, map_size, dtype=jnp.int32)]
    x = jax.random.normal(ks[0], (n, c_in, h, w), dtype=jnp.float32)

    module = ShortcutNonExpanding(
        c_in, is_client=False,
        input_orders=input_orders, orig_output_neurons=orig,
        map_orders=map_orders, map_weights=map_weights, map_size=map_size)
    out = jax.block_until_ready(module(x))

    ref = reference_forward(x, input_orders, orig, map_orders, map_weights, map_size)
    assert out.shape == (n, map_size, h, w), name
    assert jnp.allclose(out, ref, atol=1e-4, rtol=1e-4), f"mismatch vs reference: {name}"


if __name__ == "__main__":
    key = jax.random.PRNGKey(0)
    k1, k2 = jax.random.split(key)
    # Small-channel config -> NCHW / spatial-lane kernel (batch-blocked).
    _run_case("nchw_small_channels", k1, n=2, c_in=8, h=16, w=16,
              orig=4, map_size=8, map_weights=[0.5, 1.25])
    # 128-aligned channels, small spatial -> row-tiled kernel (map_size on lanes).
    _run_case("rows_deep_layer", k2, n=2, c_in=128, h=8, w=8,
              orig=64, map_size=128, map_weights=[0.75, 1.5])
    print("KERNEL_OK")
</pallas_src>

<mosaic_0001>
module attributes {stable_mosaic.version = 11 : i64} {
  func.func @_mix_nchw_kernel(%arg0: i32, %arg1: i32, %arg2: memref<8x8xf32, #tpu.memory_space<vmem>>, %arg3: memref<1x8x256xf32, #tpu.memory_space<vmem>>, %arg4: memref<1x8x256xf32, #tpu.memory_space<vmem>>) attributes {dimension_semantics = [#tpu.dimension_semantics<parallel>, #tpu.dimension_semantics<parallel>], iteration_bounds = array<i64: 2, 1>, scalar_prefetch = 0 : i64, scratch_operands = 0 : i64, tpu.core_type = #tpu.core_type<tc>, window_params = [{pipeline_mode = #tpu.pipeline_mode<synchronous>, transform_indices = @transform_0, window_bounds = array<i64: 8, 8>}, {transform_indices = @transform_1, window_bounds = array<i64: 1, 8, 256>}, {transform_indices = @transform_2, window_bounds = array<i64: 1, 8, 256>}]} {
    %c0 = arith.constant 0 : index
    %c0_0 = arith.constant 0 : index
    %0 = vector.load %arg2[%c0, %c0_0] : memref<8x8xf32, #tpu.memory_space<vmem>>, vector<8x8xf32>
    %c0_1 = arith.constant 0 : index
    %c0_2 = arith.constant 0 : index
    %c0_3 = arith.constant 0 : index
    %1 = vector.load %arg3[%c0_1, %c0_2, %c0_3] : memref<1x8x256xf32, #tpu.memory_space<vmem>>, vector<1x8x256xf32>
    %2 = vector.shape_cast %1 : vector<1x8x256xf32> to vector<8x256xf32>
    %cst = arith.constant dense<0.000000e+00> : vector<8x256xf32>
    %3 = tpu.matmul %0, %2, %cst {dimension_numbers = #tpu.dot_dimension_numbers<[1], [0], [0], [1], [0, 0, 1, 1], [], []>} : vector<8x8xf32>, vector<8x256xf32>, vector<8x256xf32> -> vector<8x256xf32>
    %c0_4 = arith.constant 0 : index
    %c0_5 = arith.constant 0 : index
    %c0_6 = arith.constant 0 : index
    %4 = vector.load %arg4[%c0_4, %c0_5, %c0_6] : memref<1x8x256xf32, #tpu.memory_space<vmem>>, vector<1x8x256xf32>
    %5 = vector.shape_cast %4 : vector<1x8x256xf32> to vector<8x256xf32>
    %6 = vector.shape_cast %3 : vector<8x256xf32> to vector<1x8x256xf32>
    tpu.vector_store %arg4[%c0_4, %c0_5, %c0_6], %6 {strides = array<i32>} : memref<1x8x256xf32, #tpu.memory_space<vmem>>, vector<1x8x256xf32>,
    return
  }
  func.func @transform_0(%arg0: i32, %arg1: i32) -> (i32, i32) {
    %c0_i32 = arith.constant 0 : i32
    %c0_i32_0 = arith.constant 0 : i32
    %c0_i32_1 = arith.constant 0 : i32
    return %c0_i32, %c0_i32_0 : i32, i32
  }
  func.func @transform_1(%arg0: i32, %arg1: i32) -> (i32, i32, i32) {
    %c0_i32 = arith.constant 0 : i32
    %c0_i32_0 = arith.constant 0 : i32
    return %arg0, %c0_i32, %arg1 : i32, i32, i32
  }
  func.func @transform_2(%arg0: i32, %arg1: i32) -> (i32, i32, i32) {
    %c0_i32 = arith.constant 0 : i32
    %c0_i32_0 = arith.constant 0 : i32
    return %arg0, %c0_i32, %arg1 : i32, i32, i32
  }
}

</mosaic_0001>

<llo_original>
// kernel: tpu_custom_call.1
$region0: #{tpu_custom_call.1}
  #allocation0 [shape = 'u32[]', space=smem, size = 0x4, offset = 0x4, fixed_abs, tag = 'smem constant byte address 0x4 - core index']
  #allocation1 [shape = 'u32[72,128]{1,0:T(1,128)}', space=vmem, size = 0x9000, scoped, tag = 'internal scratch']
  %s0 = inlined_call_operand.hbm [shape: f32[8,8], index: 0, kind: input, shape index: {}]
  %s1 = inlined_call_operand.hbm [shape: f32[2,8,256], index: 1, kind: input, shape index: {}]
  %s2 = inlined_call_operand.hbm [shape: f32[2,8,256], index: 2, kind: output, shape index: {}]
  %s3 = sld [smem:[#allocation0]]
  $region49: #{tpu_custom_call.1} parent=0
    _
  %s5 = ssub.s32 1, %s3
  %s6 = scalar_select 0, %s5, %s3
  $region1: #{tpu_custom_call.1} parent=0
    #allocation2 [shape = 'u8[4096]{0}', space=vmem, size = 0x1000, scoped, tag = 'input window, operand 0, single buffered']
    #allocation3 [shape = 's32[2]{0}', space=sflag, size = 0x8, scoped, tag = 'scoped memory for tpu_custom_call.1']
    #allocation4 [shape = 's32[2]{0}', space=sflag, size = 0x8, scoped, tag = 'scoped memory for tpu_custom_call.1']
    #allocation5 [shape = 'u8[16384]{0}', space=vmem, size = 0x4000, scoped, tag = 'input window, operand 1']
    #allocation6 [shape = 's32[2]{0}', space=sflag, size = 0x8, scoped, tag = 'scoped memory for tpu_custom_call.1']
    #allocation7 [shape = 'u8[16384]{0}', space=vmem, size = 0x4000, scoped, tag = 'output window, operand 0']
    %7 = vsyncpa [#allocation3], 0
    %8 = vsyncpa [#allocation6], 0
    %s9 = scalar_lea.sflag [#allocation6], 1
    %10 = vsyncpa %s9, 0
    %11 = vsyncpa [#allocation4], 0
    %s12 = scalar_lea.sflag [#allocation4], 1
    %13 = vsyncpa %s12, 0
    loop: start=0, step=1, limit=4
    $region2: #{tpu_custom_call.1} parent=1 // loop_pre_header
      _
    $region3: #{tpu_custom_call.1} parent=1 // loop_header
      %s15 = sphi 0, %s19
      %p16 = scmp.ge.s32.totalorder %s15, 4
      %s22 = sphi 0, %s34
      %s23 = sphi 0, %s30
      %s24 = sphi 0, %s22
      %s25 = sphi 0, %s23
      %s26 = sphi 0, %s24
      %s27 = sphi 0, %s25
      %s35 = sphi 0, %s35
      %s37 = sphi 0, %s35
      %s38 = sphi 0, %s37
      %s52 = sphi 0, %s38
      %s60 = sphi 0, %s62
      %s63 = sphi 0, %s60
      %s64 = sphi 0, %s63
      %s80 = sphi 0, %s64
      %s88 = sphi 0, %s90
      %s91 = sphi 0, %s88
      %s92 = sphi 0, %s91
      %s108 = sphi 0, %s92
    $region4: #{tpu_custom_call.1} parent=1 // loop_header_branch
      %18 = sbr.rel (%p16) target = $region8
    $region5: #{tpu_custom_call.1} parent=1 // loop_body
      %s20 = ssub.s32 %s15, 1
      %s21 = ssub.s32 %s15, 2
      %s28 = sadd.s32 1, %s23
      %p29 = scmp.ge.s32.totalorder %s28, 1
      %s30 = scalar_select %p29, 0, %s28
      %s31 = sadd.s32 1, %s22
      %s32 = scalar_select %p29, %s31, %s22
      %p33 = scmp.ge.s32.totalorder %s32, 2
      %s34 = scalar_select %p33, 0, %s32
      %s36 = sadd.s32 %s35, 1
      %p39 = scmp.eq.s32.totalorder %s15, 1
      %p40 = scmp.ne.s32.totalorder %s35, %s37
      %p41 = scmp.eq.s32.totalorder %s15, 0
      %p42 = por %p40, %p41
      %p43 = scmp.ne.s32.totalorder %s35, %s37
      %p44 = scmp.eq.s32.totalorder %s20, 1
      %p45 = por %p43, %p44
      %p46 = scmp.ne.s32.totalorder %s37, %s38
      %p47 = scmp.eq.s32.totalorder %s20, 0
      %p48 = por %p46, %p47
      %p49 = scmp.ne.s32.totalorder %s37, %s38
      %p50 = scmp.eq.s32.totalorder %s21, 1
      %p51 = por %p49, %p50
      %p53 = scmp.ne.s32.totalorder %s38, %s52
      %p54 = scmp.eq.s32.totalorder %s21, 0
      %p55 = por %p53, %p54
      %s56 = ssub.s32 %s22, %s34
      %s57 = ssub.s32 %s23, %s30
      %s58 = sor.u32 %s56, %s57
      %p59 = scmp.eq.s32.totalorder %s58, 0
      %s61 = sadd.s32 %s60, 1
      %s62 = scalar_select %p59, %s60, %s61
      %p65 = pneg %p59
      %p66 = scmp.eq.s32.totalorder %s15, 1
      %p67 = por %p65, %p66
      %p68 = scmp.ne.s32.totalorder %s60, %s63
      %p69 = scmp.eq.s32.totalorder %s15, 0
      %p70 = por %p68, %p69
      %p71 = scmp.ne.s32.totalorder %s60, %s63
      %p72 = scmp.eq.s32.totalorder %s20, 1
      %p73 = por %p71, %p72
      %p74 = scmp.ne.s32.totalorder %s63, %s64
      %p75 = scmp.eq.s32.totalorder %s20, 0
      %p76 = por %p74, %p75
      %p77 = scmp.ne.s32.totalorder %s63, %s64
      %p78 = scmp.eq.s32.totalorder %s21, 1
      %p79 = por %p77, %p78
      %p81 = scmp.ne.s32.totalorder %s64, %s80
      %p82 = scmp.eq.s32.totalorder %s21, 0
      %p83 = por %p81, %p82
      %s84 = ssub.s32 %s22, %s34
      %s85 = ssub.s32 %s23, %s30
      %s86 = sor.u32 %s84, %s85
      %p87 = scmp.eq.s32.totalorder %s86, 0
      %s89 = sadd.s32 %s88, 1
      %s90 = scalar_select %p87, %s88, %s89
      %p93 = pneg %p87
      %p94 = scmp.eq.s32.totalorder %s15, 1
      %p95 = por %p93, %p94
      %p96 = scmp.ne.s32.totalorder %s88, %s91
      %p97 = scmp.eq.s32.totalorder %s15, 0
      %p98 = por %p96, %p97
      %p99 = scmp.ne.s32.totalorder %s88, %s91
      %p100 = scmp.eq.s32.totalorder %s20, 1
      %p101 = por %p99, %p100
      %p102 = scmp.ne.s32.totalorder %s91, %s92
      %p103 = scmp.eq.s32.totalorder %s20, 0
      %p104 = por %p102, %p103
      %p105 = scmp.ne.s32.totalorder %s91, %s92
      %p106 = scmp.eq.s32.totalorder %s21, 1
      %p107 = por %p105, %p106
      %p109 = scmp.ne.s32.totalorder %s92, %s108
      %p110 = scmp.eq.s32.totalorder %s21, 0
      %p111 = por %p109, %p110
      %p112 = scmp.le.s32.totalorder 1, %s15
      %p113 = scmp.lt.s32.totalorder %s15, 3
      %p114 = pnand %p112, %p113
      %p115 = pneg %p114
      // Predicated region
      $region9: #{tpu_custom_call.1} parent=5 // pred_check
        _
      $region10: #{tpu_custom_call.1} parent=5 // pred_check_branch
        %117 = sbr.rel (%p114) target = $region12
      $region11: #{tpu_custom_call.1} parent=5 // pred_region
        %s118 = ssub.s32 %s15, 1
        // Predicated region
        $region13: #{tpu_custom_call.1} parent=11 // pred_check
          %p119 = pneg %p48
        $region14: #{tpu_custom_call.1} parent=11 // pred_check_branch
          %121 = sbr.rel (%p119) target = $region16
        $region15: #{tpu_custom_call.1} parent=11 // pred_region
          %123 = vsyncadd [#allocation3], 0
          %s125 = sshll.u32 %s0, 4
          %s126 = int_to_ptr.hbm [resolvable:$true] %s125
          %s127 = sshll.u32 [#allocation2], 4
          %s128 = int_to_ptr.vmem [resolvable:$true] %s127
          %130 = dma.hbm_to_vmem [thread:$0]  %s126, 128, %s128, [#allocation3]
        $region16: #{tpu_custom_call.1} parent=11 // pred_fallthru
          _
      $region12: #{tpu_custom_call.1} parent=5 // pred_fallthru
        _
      %p131 = scmp.lt.s32.totalorder %s15, 2
      // Predicated region
      $region17: #{tpu_custom_call.1} parent=5 // pred_check
        %p132 = pneg %p131
      $region18: #{tpu_custom_call.1} parent=5 // pred_check_branch
        %134 = sbr.rel (%p132) target = $region20
      $region19: #{tpu_custom_call.1} parent=5 // pred_region
        // Predicated region
        $region21: #{tpu_custom_call.1} parent=19 // pred_check
          %p135 = pneg %p70
        $region22: #{tpu_custom_call.1} parent=19 // pred_check_branch
          %137 = sbr.rel (%p135) target = $region24
        $region23: #{tpu_custom_call.1} parent=19 // pred_region
          %s138 = sand.u32 %s60, 1
          %s139 = scalar_lea.sflag [#allocation6], %s138
          %s140 = sand.u32 %s60, 1
          %s141 = smul.addr %s140, 16
          %s142 = scalar_lea.vmem [#allocation5], %s141
          %s143 = smul.u32 2, %s23
          %145 = vsyncadd %s139, 0
          %s146 = smul.addr %s22, 2
          %s147 = sadd.s32 %s143, %s146
          %s148 = smul.addr %s147, 8
          %s149 = scalar_lea.hbm %s1, %s148
          %s151 = sshll.u32 %s149, 4
          %s152 = int_to_ptr.hbm [resolvable:$true] %s151
          %s153 = sshll.u32 %s142, 4
          %s154 = int_to_ptr.vmem [resolvable:$true] %s153
          %156 = dma.hbm_to_vmem [thread:$0]  %s152, 256, %s154, %s139
        $region24: #{tpu_custom_call.1} parent=19 // pred_fallthru
          _
      $region20: #{tpu_custom_call.1} parent=5 // pred_fallthru
        _
      %p157 = scmp.le.s32.totalorder 1, %s15
      %p158 = scmp.lt.s32.totalorder %s15, 3
      %p159 = pnand %p157, %p158
      %p160 = pneg %p159
      // Predicated region
      $region25: #{tpu_custom_call.1} parent=5 // pred_check
        _
      $region26: #{tpu_custom_call.1} parent=5 // pred_check_branch
        %162 = sbr.rel (%p159) target = $region28
      $region27: #{tpu_custom_call.1} parent=5 // pred_region
        %s163 = ssub.s32 %s15, 1
        // Predicated region
        $region29: #{tpu_custom_call.1} parent=27 // pred_check
          %p164 = pneg %p48
        $region30: #{tpu_custom_call.1} parent=27 // pred_check_branch
          %166 = sbr.rel (%p164) target = $region32
        $region31: #{tpu_custom_call.1} parent=27 // pred_region
          %168 = dma.done [#allocation3], 128
        $region32: #{tpu_custom_call.1} parent=27 // pred_fallthru
          _
        %s169 = sand.u32 %s63, 1
        %s170 = scalar_lea.sflag [#allocation6], %s169
        %s171 = sand.u32 %s63, 1
        %s172 = smul.addr %s171, 16
        %s173 = scalar_lea.vmem [#allocation5], %s172
        // Predicated region
        $region33: #{tpu_custom_call.1} parent=27 // pred_check
          %p174 = pneg %p76
        $region34: #{tpu_custom_call.1} parent=27 // pred_check_branch
          %176 = sbr.rel (%p174) target = $region36
        $region35: #{tpu_custom_call.1} parent=27 // pred_region
          %178 = dma.done %s170, 256
        $region36: #{tpu_custom_call.1} parent=27 // pred_fallthru
          _
        %p179 = pneg %p48
        %p180 = pneg %p45
        %s181 = sand.u32 %s63, 1
        %s182 = scalar_lea.sflag [#allocation6], %s181
        %s183 = sand.u32 %s63, 1
        %s184 = smul.addr %s183, 16
        %s185 = scalar_lea.vmem [#allocation5], %s184
        %p186 = pneg %p76
        %p187 = pneg %p73
        %p188 = pneg %p104
        %p189 = pneg %p101
        %s190 = sand.u32 %s91, 1
        %s191 = scalar_lea.sflag [#allocation4], %s190
        %s192 = sand.u32 %s91, 1
        %s193 = smul.addr %s192, 16
        %s194 = scalar_lea.vmem [#allocation7], %s193
        %s195 = smul.u32 2, %s25
        %s196 = smul.u32 2, %s25
        %v197 = vld [vmem:[#allocation2] sm:$0xff]
        %v198 = vld [vmem:[%s173] sm:$0xff]
        %v199 = vld [vmem:[%s173 + $0x8] sm:$0xff]
        %vm200 = vcmask 64512
        %v202 = vsel %vm200, %v197, 0
        %204 = vmatpush.msra.mxu0 0.0
        %205 = vmatpush.msra.mxu0 0.0
        %206 = vmatpush.msra.mxu0 0.0
        %207 = vmatpush.msra.mxu0 0.0
        %208 = vmatpush.msra.mxu0 0.0
        %209 = vmatpush.msra.mxu0 0.0
        %210 = vmatpush.msra.mxu0 0.0
        %211 = vmatpush.msra.mxu0 0.0
        %212 = vmatpush.msra.mxu0 0.0
        %213 = vmatpush.msra.mxu0 0.0
        %214 = vmatpush.msra.mxu0 0.0
        %215 = vmatpush.msra.mxu0 0.0
        %216 = vmatpush.msra.mxu0 0.0
        %217 = vmatpush.msra.mxu0 0.0
        %218 = vmatpush.msra.mxu0 0.0
        %219 = vmatpush.msra.mxu0 %v198
        %220 = vmatmul.f32.gmra.mxu0 %v202
        %v221 = vpop.f32.mrf.mxu0
        %v222 = vadd.f32 0.0, %v221
        %223 = vdwg.mxu0
        %224 = vmatpush.msra.mxu0 0.0
        %225 = vmatpush.msra.mxu0 0.0
        %226 = vmatpush.msra.mxu0 0.0
        %227 = vmatpush.msra.mxu0 0.0
        %228 = vmatpush.msra.mxu0 0.0
        %229 = vmatpush.msra.mxu0 0.0
        %230 = vmatpush.msra.mxu0 0.0
        %231 = vmatpush.msra.mxu0 0.0
        %232 = vmatpush.msra.mxu0 0.0
        %233 = vmatpush.msra.mxu0 0.0
        %234 = vmatpush.msra.mxu0 0.0
        %235 = vmatpush.msra.mxu0 0.0
        %236 = vmatpush.msra.mxu0 0.0
        %237 = vmatpush.msra.mxu0 0.0
        %238 = vmatpush.msra.mxu0 0.0
        %239 = vmatpush.msra.mxu0 %v199
        %240 = vmatmul.f32.gmra.mxu0 %v202
        %v241 = vpop.f32.mrf.mxu0
        %v242 = vadd.f32 0.0, %v241
        %243 = vdwg.mxu0
        %244 = vst [vmem:[%s194] sm:$0xff] %v222
        %245 = vst [vmem:[%s194 + $0x8] sm:$0xff] %v242
        %s246 = sand.u32 %s91, 1
        %s247 = scalar_lea.sflag [#allocation4], %s246
        %s248 = sand.u32 %s91, 1
        %s249 = smul.addr %s248, 16
        %s250 = scalar_lea.vmem [#allocation7], %s249
        // Predicated region
        $region37: #{tpu_custom_call.1} parent=27 // pred_check
          %p251 = pneg %p101
        $region38: #{tpu_custom_call.1} parent=27 // pred_check_branch
          %253 = sbr.rel (%p251) target = $region40
        $region39: #{tpu_custom_call.1} parent=27 // pred_region
          %s254 = smul.u32 2, %s25
          %256 = vsyncadd %s247, 0
          %s257 = smul.addr %s24, 2
          %s258 = sadd.s32 %s254, %s257
          %s259 = smul.addr %s258, 8
          %s260 = scalar_lea.hbm %s2, %s259
          %s262 = sshll.u32 %s250, 4
          %s263 = int_to_ptr.vmem [resolvable:$true] %s262
          %s264 = sshll.u32 %s260, 4
          %s265 = int_to_ptr.hbm [resolvable:$true] %s264
          %267 = dma.vmem_to_hbm [thread:$0]  %s263, 256, %s265, %s247
        $region40: #{tpu_custom_call.1} parent=27 // pred_fallthru
          _
      $region28: #{tpu_custom_call.1} parent=5 // pred_fallthru
        _
      %p268 = scmp.le.s32.totalorder 2, %s15
      // Predicated region
      $region41: #{tpu_custom_call.1} parent=5 // pred_check
        %p269 = pneg %p268
      $region42: #{tpu_custom_call.1} parent=5 // pred_check_branch
        %271 = sbr.rel (%p269) target = $region44
      $region43: #{tpu_custom_call.1} parent=5 // pred_region
        %s272 = ssub.s32 %s15, 2
        // Predicated region
        $region45: #{tpu_custom_call.1} parent=43 // pred_check
          %p273 = pneg %p107
        $region46: #{tpu_custom_call.1} parent=43 // pred_check_branch
          %275 = sbr.rel (%p273) target = $region48
        $region47: #{tpu_custom_call.1} parent=43 // pred_region
          %s276 = sand.u32 %s92, 1
          %s277 = scalar_lea.sflag [#allocation4], %s276
          %s278 = sand.u32 %s92, 1
          %s279 = smul.addr %s278, 16
          %s280 = scalar_lea.vmem [#allocation7], %s279
          %282 = dma.done %s277, 256
        $region48: #{tpu_custom_call.1} parent=43 // pred_fallthru
          _
      $region44: #{tpu_custom_call.1} parent=5 // pred_fallthru
        _
    $region6: #{tpu_custom_call.1} parent=1 // loop_footer
      %s19 = sadd.s32 1, %s15
    $region7: #{tpu_custom_call.1} parent=1 // loop_footer_branch
      %14 = sbr.rel target = $region3
    $region8: #{tpu_custom_call.1} parent=1 // loop_exit
      _
    %283 = vsyncpa [#allocation3], 1
    %s284 = scalar_lea.sflag [#allocation3], 1
    %285 = vsyncpa %s284, 1
    %286 = vsyncpa [#allocation6], 1
    %s287 = scalar_lea.sflag [#allocation6], 1
    %288 = vsyncpa %s287, 1
    %289 = vsyncpa [#allocation4], 1
    %s290 = scalar_lea.sflag [#allocation4], 1
    %291 = vsyncpa %s290, 1

</llo_original>
